<compile_context>
chip_gen: v6e
topology: v6e:2x2x1
jax: 0.10.0
libtpu: 0.0.40
codegen_flags: <defaults>
</compile_context>

<pallas_src>
import functools

import jax
import jax.numpy as jnp
from jax.experimental import pallas as pl
from jax.experimental.pallas import tpu as pltpu

_VMEM_LIMIT = 48 * 1024 * 1024     # explicit scoped-VMEM cap (safe on v5e/v6e/v7x)
_VMEM_BUDGET = 12 * 1024 * 1024    # target double-buffered working set per pallas_call
_WBLOCK_BUDGET = 2 * 1024 * 1024   # max bf16 weight block streamed per K step


# ----------------------------------------------------------------------------
# Tile selection
# ----------------------------------------------------------------------------
def _pick_tk(K, oc):
    """K tile: keep each streamed (tk, oc) bf16 weight block small enough that the
    pipeline stays double-buffered even on v7x's 64 MiB VMEM."""
    if K * oc * 2 <= _WBLOCK_BUDGET:
        return K
    cap = max(128, min(K // 128, _WBLOCK_BUDGET // (oc * 2 * 128)) * 128)
    for tk in range(cap, 127, -128):
        if K % tk == 0:
            return tk
    return K


def _pick_tm(M, tk, oc, out_bytes):
    """Row tile: as large as possible (mem-bound layers want 512-1024 rows) while the
    double-buffered working set stays inside the VMEM budget."""
    if M <= 8:
        return M

    def footprint(tm):
        return (2 * tm * tk * 2            # x blocks (bf16, double-buffered)
                + 2 * tk * oc * 2          # weight blocks (bf16)
                + 2 * tm * oc * out_bytes  # output blocks
                + tm * oc * 4              # f32 accumulator scratch
                + 2 * oc * 4)              # bias

    tm = 1024
    while tm > 8 and (tm > M or footprint(tm) > _VMEM_BUDGET):
        tm //= 2
    return tm


# ----------------------------------------------------------------------------
# Pallas kernel: K-tiled (pre-act) matmul + bias + (post-act), f32 accumulator
# ----------------------------------------------------------------------------
def _fused_mm_kernel(x_ref, w_ref, b_ref, o_ref, acc_ref, *, pre_act, post_act):
    @pl.when(pl.program_id(1) == 0)
    def _init():
        acc_ref[...] = jnp.zeros_like(acc_ref)

    x = x_ref[...]                                   # bf16 tile
    if pre_act == "leaky":
        x = jnp.where(x > 0, x, 0.2 * x)             # LeakyReLU(0.2); leaky(0) == 0
    elif pre_act == "relu":
        x = jnp.maximum(x, 0)
    acc_ref[...] += jnp.dot(x, w_ref[...], preferred_element_type=jnp.float32)

    @pl.when(pl.program_id(1) == pl.num_programs(1) - 1)
    def _finalize():
        y = acc_ref[...] + b_ref[...]                # f32 epilogue
        if post_act == "sigmoid":
            y = jax.nn.sigmoid(y)
        o_ref[...] = y.astype(o_ref.dtype)


def fused_matmul(x, w, b, *, pre_act="none", post_act="none", out_dtype=jnp.bfloat16):
    """out = post_act(pre_act(x) @ w + b).  x:(M,K), w:(K,OC) bf16, b:(OC,) f32."""
    M, K = x.shape
    OC = w.shape[1]
    out_bytes = jnp.dtype(out_dtype).itemsize
    tk = _pick_tk(K, OC)
    tm = _pick_tm(M, tk, OC, out_bytes)
    n_m = pl.cdiv(M, tm)
    Mp = n_m * tm
    xp = x.astype(jnp.bfloat16)
    if Mp != M:                                      # only pad when actually needed
        xp = jnp.pad(xp, ((0, Mp - M), (0, 0)))
    kern = functools.partial(_fused_mm_kernel, pre_act=pre_act, post_act=post_act)
    out = pl.pallas_call(
        kern,
        out_shape=jax.ShapeDtypeStruct((Mp, OC), out_dtype),
        grid=(n_m, K // tk),
        in_specs=[
            pl.BlockSpec((tm, tk), lambda i, k: (i, k)),
            pl.BlockSpec((tk, OC), lambda i, k: (k, 0)),
            pl.BlockSpec((1, OC), lambda i, k: (0, 0)),
        ],
        out_specs=pl.BlockSpec((tm, OC), lambda i, k: (i, 0)),
        scratch_shapes=[pltpu.VMEM((tm, OC), jnp.float32)],
        compiler_params=pltpu.CompilerParams(
            dimension_semantics=("parallel", "arbitrary"),
            vmem_limit_bytes=_VMEM_LIMIT),
    )(xp, w.astype(jnp.bfloat16), b.reshape(1, OC).astype(jnp.float32))
    return out if Mp == M else out[:M]


# ----------------------------------------------------------------------------
# Pallas kernel: fused skip-concat + Pixel-Attention gate
# ----------------------------------------------------------------------------
def _pa_gate_kernel(x1_ref, x2_ref, w_ref, b_ref, o_ref):
    """y = concat([x1, x2]);  o = y * sigmoid(y @ W + b)   (concat never hits HBM)."""
    y = jnp.concatenate([x1_ref[...], x2_ref[...]], axis=-1)          # bf16 (tm, nf)
    g = jnp.dot(y, w_ref[...], preferred_element_type=jnp.float32) + b_ref[...]
    g = jax.nn.sigmoid(g)                                             # f32 epilogue
    o_ref[...] = (y.astype(jnp.float32) * g).astype(o_ref.dtype)


def pixel_attention(x1, x2, w, b):
    """PA gate on concat([x1, x2], channel) without materializing the concat."""
    N, H, Wd, C1 = x1.shape
    C2 = x2.shape[-1]
    nf = C1 + C2
    M = N * H * Wd
    tm = _pick_tm(M, nf, nf, 2)
    n_m = pl.cdiv(M, tm)
    Mp = n_m * tm
    a1 = x1.reshape(M, C1).astype(jnp.bfloat16)
    a2 = x2.reshape(M, C2).astype(jnp.bfloat16)
    if Mp != M:
        a1 = jnp.pad(a1, ((0, Mp - M), (0, 0)))
        a2 = jnp.pad(a2, ((0, Mp - M), (0, 0)))
    out = pl.pallas_call(
        _pa_gate_kernel,
        out_shape=jax.ShapeDtypeStruct((Mp, nf), jnp.bfloat16),
        grid=(n_m,),
        in_specs=[
            pl.BlockSpec((tm, C1), lambda i: (i, 0)),
            pl.BlockSpec((tm, C2), lambda i: (i, 0)),
            pl.BlockSpec((nf, nf), lambda i: (0, 0)),
            pl.BlockSpec((1, nf), lambda i: (0, 0)),
        ],
        out_specs=pl.BlockSpec((tm, nf), lambda i: (i, 0)),
        compiler_params=pltpu.CompilerParams(
            dimension_semantics=("parallel",),
            vmem_limit_bytes=_VMEM_LIMIT),
    )(a1, a2, w.astype(jnp.bfloat16), b.reshape(1, nf).astype(jnp.float32))
    out = out if Mp == M else out[:M]
    return out.reshape(N, H, Wd, nf)


# ----------------------------------------------------------------------------
# Conv / ConvTranspose wrappers (im2col glue in JAX, fused matmul in Pallas)
# ----------------------------------------------------------------------------
def conv2d_k4s2p1(x, w_packed, b, *, pre_act="none"):
    """Stride-2 4x4 conv, pad 1.  x:(N,H,W,C) bf16; w_packed:(16*C, OC) bf16."""
    N, H, Wd, C = x.shape
    OC = w_packed.shape[1]
    OH, OW = H // 2, Wd // 2
    xp = jnp.pad(x, ((0, 0), (1, 1), (1, 1), (0, 0)))
    pats = [xp[:, di:di + 2 * OH:2, dj:dj + 2 * OW:2, :]
            for di in range(4) for dj in range(4)]
    p = jnp.concatenate(pats, axis=-1).reshape(N * OH * OW, 16 * C)
    out = fused_matmul(p, w_packed, b, pre_act=pre_act)
    return out.reshape(N, OH, OW, OC)


def conv_transpose2d_k4s2p1(x, w_packed, b_packed, *, pre_act="none",
                            post_act="none", out_dtype=jnp.bfloat16):
    """Stride-2 4x4 transposed conv, pad 1, via the 4-output-phase decomposition:
    one matmul (N*H*W, 9C) @ (9C, 4*OC) on the un-dilated input (no zero MACs),
    then an interleave of the 4 phase groups into the (N, 2H, 2W, OC) output."""
    N, H, Wd, C = x.shape
    OC = w_packed.shape[1] // 4
    xp = jnp.pad(x, ((0, 0), (1, 1), (1, 1), (0, 0)))
    taps = [xp[:, dr:dr + H, dc:dc + Wd, :] for dr in range(3) for dc in range(3)]
    p = jnp.concatenate(taps, axis=-1).reshape(N * H * Wd, 9 * C)
    y = fused_matmul(p, w_packed, b_packed, pre_act=pre_act, post_act=post_act,
                     out_dtype=out_dtype)
    y = y.reshape(N, H, Wd, 2, 2, OC)
    return jnp.transpose(y, (0, 1, 3, 2, 4, 5)).reshape(N, 2 * H, 2 * Wd, OC)


# ----------------------------------------------------------------------------
# One-time weight packing (matmul layout, BN folding, bf16 cast)
# ----------------------------------------------------------------------------
def pack_conv2d(W, b):
    """PyTorch Conv2d weight (OC,IC,4,4) -> (16*IC, OC) bf16, bias f32."""
    w2 = jnp.transpose(W, (2, 3, 1, 0)).reshape(16 * W.shape[1], W.shape[0])
    return w2.astype(jnp.bfloat16), b.astype(jnp.float32)


def pack_conv_transpose2d(W, b):
    """PyTorch ConvTranspose2d weight (IC,OC,4,4) -> phase-packed (9*IC, 4*OC) bf16.

    Output phase (pi, pj) = parity of the output pixel.  Tap (dr, dc) reads the
    un-dilated input at spatial offset (dr-1, dc-1):
       out[2m+pi, 2n+pj] = sum_{dr,dc} x[m+dr-1, n+dc-1] . W[:, :, 3+pi-2dr, 3+pj-2dc]
    (only taps with a valid kernel index contribute; the rest are zero rows)."""
    IC, OC = W.shape[0], W.shape[1]
    Wp = jnp.zeros((3, 3, IC, 2, 2, OC), jnp.float32)
    for dr in range(3):
        for dc in range(3):
            for pi in range(2):
                for pj in range(2):
                    ky, kx = 3 + pi - 2 * dr, 3 + pj - 2 * dc
                    if 0 <= ky < 4 and 0 <= kx < 4:
                        Wp = Wp.at[dr, dc, :, pi, pj, :].set(W[:, :, ky, kx])
    return (Wp.reshape(9 * IC, 4 * OC).astype(jnp.bfloat16),
            jnp.tile(b, 4).astype(jnp.float32))


def pack_pa(W, b):
    """PyTorch 1x1 Conv2d weight (nf,nf,1,1) -> (nf_in, nf_out) bf16, bias f32."""
    return (jnp.transpose(W[:, :, 0, 0], (1, 0)).astype(jnp.bfloat16),
            b.astype(jnp.float32))


def _fold_bn(W, b, bn, *, transpose):
    gamma, beta, mean, var = bn
    scale = gamma / jnp.sqrt(var + 1e-5)
    if transpose:   # (IC, OC, k, k) -> scale over axis 1
        Wf = W * scale[None, :, None, None]
    else:           # (OC, IC, k, k) -> scale over axis 0
        Wf = W * scale[:, None, None, None]
    bf = (b - mean) * scale + beta
    return Wf, bf


def make_block_configs(fc):
    # innermost first
    return [
        dict(name="inner",  outer=16 * fc, inp=16 * fc, inner=16 * fc, layer_mod=1, innermost=True),
        dict(name="block6", outer=16 * fc, inp=16 * fc, inner=16 * fc, layer_mod=2, innermost=False),
        dict(name="block5", outer=16 * fc, inp=16 * fc, inner=16 * fc, layer_mod=2, innermost=False),
        dict(name="block4", outer=8 * fc,  inp=8 * fc,  inner=16 * fc, layer_mod=2, innermost=False),
        dict(name="block3", outer=4 * fc,  inp=4 * fc,  inner=8 * fc,  layer_mod=2, innermost=False),
        dict(name="block2", outer=2 * fc,  inp=2 * fc,  inner=4 * fc,  layer_mod=2, innermost=False),
        dict(name="block1", outer=fc,      inp=fc,      inner=2 * fc,  layer_mod=2, innermost=False),
    ]


def init_params(key, in_ch, out_ch, fc):
    keys = iter(jax.random.split(key, 256))
    nxt = lambda: next(keys)

    def conv_w(oc, ic, k=4, scale=0.05):
        return scale * jax.random.normal(nxt(), (oc, ic, k, k), jnp.float32)

    def convT_w(ic, oc, k=4, scale=0.05):
        return scale * jax.random.normal(nxt(), (ic, oc, k, k), jnp.float32)

    def bias(n):
        return 0.01 * jax.random.normal(nxt(), (n,), jnp.float32)

    def bn(n):
        g = 1.0 + 0.1 * jax.random.normal(nxt(), (n,), jnp.float32)
        bt = 0.1 * jax.random.normal(nxt(), (n,), jnp.float32)
        m = 0.1 * jax.random.normal(nxt(), (n,), jnp.float32)
        v = jax.random.uniform(nxt(), (n,), jnp.float32, 0.5, 1.5)
        return (g, bt, m, v)

    cfgs = make_block_configs(fc)
    blocks = []
    for cfg in cfgs:
        inner, inp, outer, lm = cfg["inner"], cfg["inp"], cfg["outer"], cfg["layer_mod"]
        dw, db = conv_w(inner, inp), bias(inner)
        if not cfg["innermost"]:
            dw, db = _fold_bn(dw, db, bn(inner), transpose=False)   # downnorm folded
        dwp, dbp = pack_conv2d(dw, db)
        uw, ub = convT_w(inner * lm, outer), bias(outer)
        uw, ub = _fold_bn(uw, ub, bn(outer), transpose=True)        # upnorm folded
        uwp, ubp = pack_conv_transpose2d(uw, ub)
        nf = inp + outer                                            # PA channels (concat)
        pw = 0.05 * jax.random.normal(nxt(), (nf, nf, 1, 1), jnp.float32)
        pb = 0.01 * jax.random.normal(nxt(), (nf,), jnp.float32)
        pwp, pbp = pack_pa(pw, pb)
        blocks.append(dict(down_w=dwp, down_b=dbp, up_w=uwp, up_b=ubp,
                           pa_w=pwp, pa_b=pbp))

    tdw, tdb = pack_conv2d(conv_w(fc, in_ch), bias(fc))
    tuw, tub = pack_conv_transpose2d(convT_w(2 * fc, out_ch), bias(out_ch))
    top = dict(down_w=tdw, down_b=tdb, up_w=tuw, up_b=tub)
    return dict(blocks=blocks, top=top), cfgs


# ----------------------------------------------------------------------------
# Forward pass
# ----------------------------------------------------------------------------
def unet_large_pa_forward(x_nchw, params, cfgs):
    x = jnp.transpose(x_nchw, (0, 2, 3, 1)).astype(jnp.bfloat16)  # NCHW -> NHWC, bf16

    # outermost downconv (no pre-activation, no norm)
    h = conv2d_k4s2p1(x, params["top"]["down_w"], params["top"]["down_b"], pre_act="none")

    def block_fwd(level, xin):
        cfg, p = cfgs[level], params["blocks"][level]
        # down: LeakyReLU(0.2) -> Conv(k4s2p1) -> [BN folded]
        d = conv2d_k4s2p1(xin, p["down_w"], p["down_b"], pre_act="leaky")
        if not cfg["innermost"]:
            d = block_fwd(level - 1, d)
        # up: ReLU -> ConvTranspose(k4s2p1) -> [BN folded]  (Dropout = identity, eval)
        u = conv_transpose2d_k4s2p1(d, p["up_w"], p["up_b"], pre_act="relu")
        # skip-concat + Pixel Attention gate fused in one kernel
        return pixel_attention(xin, u, p["pa_w"], p["pa_b"])

    h = block_fwd(len(cfgs) - 1, h)  # outermost UnetBlock+PA ("block1")

    # ReLU -> ConvTranspose(2fc -> out_ch) -> Sigmoid  (f32 output)
    out = conv_transpose2d_k4s2p1(h, params["top"]["up_w"], params["top"]["up_b"],
                                  pre_act="relu", post_act="sigmoid",
                                  out_dtype=jnp.float32)
    return jnp.transpose(out, (0, 3, 1, 2))  # NHWC -> NCHW


# ----------------------------------------------------------------------------
# Dense reference for the transposed conv (used only for a one-off self-check)
# ----------------------------------------------------------------------------
def _convT_reference(x, W, b):
    """Zero-dilation reference for ConvTranspose2d(k=4, s=2, p=1), NHWC, f32."""
    N, H, Wd, C = x.shape
    OC = W.shape[1]
    z = jnp.zeros((N, 2 * H - 1, 2 * Wd - 1, C), jnp.float32).at[:, ::2, ::2, :].set(x)
    z = jnp.pad(z, ((0, 0), (2, 2), (2, 2), (0, 0)))
    wf = jnp.flip(W, axis=(2, 3))
    out = jnp.zeros((N, 2 * H, 2 * Wd, OC), jnp.float32) + b
    for di in range(4):
        for dj in range(4):
            out = out + jnp.einsum("nhwc,co->nhwo",
                                   z[:, di:di + 2 * H, dj:dj + 2 * Wd, :],
                                   wf[:, :, di, dj])
    return out


# ----------------------------------------------------------------------------
if __name__ == "__main__":
    # 8 stride-2 levels require spatial >= 256; keep filter_channel small instead.
    N, IN_CH, OUT_CH, FC, H, W = 2, 3, 3, 4, 256, 256

    key = jax.random.PRNGKey(0)
    kp, kx, kc = jax.random.split(key, 3)
    params, cfgs = init_params(kp, IN_CH, OUT_CH, FC)

    # --- self-check: phase-decomposed transposed conv vs dense reference ---
    kw, kb, kxx = jax.random.split(kc, 3)
    Wt = 0.05 * jax.random.normal(kw, (8, 8, 4, 4), jnp.float32)
    bt = 0.01 * jax.random.normal(kb, (8,), jnp.float32)
    xt = jax.random.normal(kxx, (1, 8, 8, 8), jnp.float32).astype(jnp.bfloat16)
    wtp, btp = pack_conv_transpose2d(Wt, bt)
    got = conv_transpose2d_k4s2p1(xt, wtp, btp, pre_act="relu", out_dtype=jnp.float32)
    ref = _convT_reference(jnp.maximum(xt.astype(jnp.float32), 0.0),
                           Wt.astype(jnp.bfloat16).astype(jnp.float32), bt)
    assert bool(jnp.max(jnp.abs(got - ref)) < 0.05), "ConvT phase decomposition mismatch"

    x = jax.random.normal(kx, (N, IN_CH, H, W), jnp.float32)
    fwd = jax.jit(lambda xx: unet_large_pa_forward(xx, params, cfgs))
    out = jax.block_until_ready(fwd(x))

    assert out.shape == (N, OUT_CH, H, W), out.shape
    assert bool(jnp.all(jnp.isfinite(out)))
    assert bool(jnp.all((out >= 0.0) & (out <= 1.0)))  # sigmoid output range
    print("KERNEL_OK")
</pallas_src>

<mosaic_0001>
module attributes {stable_mosaic.version = 11 : i64} {
  func.func @_fused_mm_kernel(%arg0: i32, %arg1: i32, %arg2: memref<64x72xbf16, #tpu.memory_space<vmem>>, %arg3: memref<72x32xbf16, #tpu.memory_space<vmem>>, %arg4: memref<1x32xf32, #tpu.memory_space<vmem>>, %arg5: memref<64x32xf32, #tpu.memory_space<vmem>>, %arg6: memref<64x32xf32, #tpu.memory_space<vmem>>) attributes {dimension_semantics = [#tpu.dimension_semantics<parallel>, #tpu.dimension_semantics<arbitrary>], iteration_bounds = array<i64: 1, 1>, scalar_prefetch = 0 : i64, scratch_operands = 1 : i64, tpu.core_type = #tpu.core_type<tc>, window_params = [{transform_indices = @transform_0, window_bounds = array<i64: 64, 72>}, {transform_indices = @transform_1, window_bounds = array<i64: 72, 32>}, {pipeline_mode = #tpu.pipeline_mode<synchronous>, transform_indices = @transform_2, window_bounds = array<i64: 1, 32>}, {transform_indices = @transform_3, window_bounds = array<i64: 64, 32>}]} {
    %c0_i32 = arith.constant 0 : i32
    %0 = arith.cmpi eq, %arg1, %c0_i32 : i32
    %1 = arith.extui %0 : i1 to i32
    %c0_i32_0 = arith.constant 0 : i32
    %2 = arith.cmpi ne, %1, %c0_i32_0 : i32
    scf.if %2 {
      %cst_11 = arith.constant 0.000000e+00 : f32
      %14 = vector.broadcast %cst_11 : f32 to vector<64x32xf32>
      %c0_12 = arith.constant 0 : index
      %c0_13 = arith.constant 0 : index
      %15 = vector.load %arg6[%c0_12, %c0_13] : memref<64x32xf32, #tpu.memory_space<vmem>>, vector<64x32xf32>
      tpu.vector_store %arg6[%c0_12, %c0_13], %14 {strides = array<i32>} : memref<64x32xf32, #tpu.memory_space<vmem>>, vector<64x32xf32>,
    } else {
    }
    %c0 = arith.constant 0 : index
    %c0_1 = arith.constant 0 : index
    %3 = vector.load %arg2[%c0, %c0_1] : memref<64x72xbf16, #tpu.memory_space<vmem>>, vector<64x72xbf16>
    %cst = arith.constant 0.000000e+00 : bf16
    %4 = vector.broadcast %cst : bf16 to vector<64x72xbf16>
    %5 = arith.maximumf %3, %4 : vector<64x72xbf16>
    %c0_2 = arith.constant 0 : index
    %c0_3 = arith.constant 0 : index
    %6 = vector.load %arg6[%c0_2, %c0_3] : memref<64x32xf32, #tpu.memory_space<vmem>>, vector<64x32xf32>
    %c0_4 = arith.constant 0 : index
    %c0_5 = arith.constant 0 : index
    %7 = vector.load %arg3[%c0_4, %c0_5] : memref<72x32xbf16, #tpu.memory_space<vmem>>, vector<72x32xbf16>
    %cst_6 = arith.constant dense<0.000000e+00> : vector<64x32xf32>
    %8 = tpu.matmul %5, %7, %cst_6 {dimension_numbers = #tpu.dot_dimension_numbers<[1], [0], [0], [1], [0, 0, 1, 1], [], []>} : vector<64x72xbf16>, vector<72x32xbf16>, vector<64x32xf32> -> vector<64x32xf32>
    %9 = arith.addf %6, %8 : vector<64x32xf32>
    %c0_7 = arith.constant 0 : index
    %c0_8 = arith.constant 0 : index
    %10 = vector.load %arg6[%c0_7, %c0_8] : memref<64x32xf32, #tpu.memory_space<vmem>>, vector<64x32xf32>
    tpu.vector_store %arg6[%c0_7, %c0_8], %9 {strides = array<i32>} : memref<64x32xf32, #tpu.memory_space<vmem>>, vector<64x32xf32>,
    %c0_i32_9 = arith.constant 0 : i32
    %11 = arith.cmpi eq, %arg1, %c0_i32_9 : i32
    %12 = arith.extui %11 : i1 to i32
    %c0_i32_10 = arith.constant 0 : i32
    %13 = arith.cmpi ne, %12, %c0_i32_10 : i32
    scf.if %13 {
      %c0_11 = arith.constant 0 : index
      %c0_12 = arith.constant 0 : index
      %14 = vector.load %arg6[%c0_11, %c0_12] : memref<64x32xf32, #tpu.memory_space<vmem>>, vector<64x32xf32>
      %c0_13 = arith.constant 0 : index
      %c0_14 = arith.constant 0 : index
      %15 = vector.load %arg4[%c0_13, %c0_14] : memref<1x32xf32, #tpu.memory_space<vmem>>, vector<1x32xf32>
      %16 = vector.broadcast %15 : vector<1x32xf32> to vector<64x32xf32>
      %17 = arith.addf %14, %16 : vector<64x32xf32>
      %c0_15 = arith.constant 0 : index
      %c0_16 = arith.constant 0 : index
      %18 = vector.load %arg5[%c0_15, %c0_16] : memref<64x32xf32, #tpu.memory_space<vmem>>, vector<64x32xf32>
      tpu.vector_store %arg5[%c0_15, %c0_16], %17 {strides = array<i32>} : memref<64x32xf32, #tpu.memory_space<vmem>>, vector<64x32xf32>,
    } else {
    }
    return
  }
  func.func @transform_0(%arg0: i32, %arg1: i32) -> (i32, i32) {
    %c0_i32 = arith.constant 0 : i32
    return %arg0, %arg1 : i32, i32
  }
  func.func @transform_1(%arg0: i32, %arg1: i32) -> (i32, i32) {
    %c0_i32 = arith.constant 0 : i32
    %c0_i32_0 = arith.constant 0 : i32
    return %arg1, %c0_i32 : i32, i32
  }
  func.func @transform_2(%arg0: i32, %arg1: i32) -> (i32, i32) {
    %c0_i32 = arith.constant 0 : i32
    %c0_i32_0 = arith.constant 0 : i32
    %c0_i32_1 = arith.constant 0 : i32
    return %c0_i32, %c0_i32_0 : i32, i32
  }
  func.func @transform_3(%arg0: i32, %arg1: i32) -> (i32, i32) {
    %c0_i32 = arith.constant 0 : i32
    %c0_i32_0 = arith.constant 0 : i32
    return %arg0, %c0_i32 : i32, i32
  }
}

</mosaic_0001>

<llo_original>
// kernel: tpu_custom_call.1
$region0: #{tpu_custom_call.1}
  #allocation0 [shape = 'u32[]', space=smem, size = 0x4, offset = 0x4, fixed_abs, tag = 'smem constant byte address 0x4 - core index']
  #allocation1 [shape = 'u32[144,128]{1,0:T(1,128)}', space=vmem, size = 0x12000, scoped, tag = 'internal scratch']
  #allocation2 [shape = 'f32[64,32]{1,0:T(8,128)}', space=vmem, size = 0x8000, scoped, tag = 'scratch operand']
  %s0 = inlined_call_operand.vmem [shape: bf16[64,72], index: 0, kind: input, shape index: {}]
  %s1 = inlined_call_operand.vmem [shape: bf16[72,32], index: 1, kind: input, shape index: {}]
  %s2 = inlined_call_operand.vmem [shape: f32[1,32], index: 2, kind: input, shape index: {}]
  %s3 = inlined_call_operand.vmem [shape: f32[64,32], index: 3, kind: output, shape index: {}]
  %s4 = sld [smem:[#allocation0]]
  $region30: #{tpu_custom_call.1} parent=0
    _
  %s6 = ssub.s32 1, %s4
  %s7 = scalar_select 0, %s6, %s4
  // Predicated region
  $region2: #{tpu_custom_call.1} parent=0 // pred_check
    _
  $region3: #{tpu_custom_call.1} parent=0 // pred_check_branch
    %9 = sbr.rel (0) target = $region5
  $region4: #{tpu_custom_call.1} parent=0 // pred_region
    _
  $region5: #{tpu_custom_call.1} parent=0 // pred_fallthru
    _
  // Predicated region
  $region6: #{tpu_custom_call.1} parent=0 // pred_check
    _
  $region7: #{tpu_custom_call.1} parent=0 // pred_check_branch
    %11 = sbr.rel (0) target = $region9
  $region8: #{tpu_custom_call.1} parent=0 // pred_region
    _
  $region9: #{tpu_custom_call.1} parent=0 // pred_fallthru
    _
  // Predicated region
  $region10: #{tpu_custom_call.1} parent=0 // pred_check
    _
  $region11: #{tpu_custom_call.1} parent=0 // pred_check_branch
    %13 = sbr.rel (0) target = $region13
  $region12: #{tpu_custom_call.1} parent=0 // pred_region
    _
  $region13: #{tpu_custom_call.1} parent=0 // pred_fallthru
    _
  %p15 = scmp.eq.s32.totalorder 0, 0
  // Predicated region
  $region14: #{tpu_custom_call.1} parent=0 // pred_check
    %p16 = pneg %p15
  $region15: #{tpu_custom_call.1} parent=0 // pred_check_branch
    %18 = sbr.rel (%p16) target = $region17
  $region16: #{tpu_custom_call.1} parent=0 // pred_region
    %vm19 = vcmask 261120
    %20 = vst.msk [vmem:[#allocation2] sm:$0xff] %vm19, 0.0
    %21 = vst.msk [vmem:[#allocation2 + $0x8] sm:$0xff] %vm19, 0.0
    %22 = vst.msk [vmem:[#allocation2 + $0x10] sm:$0xff] %vm19, 0.0
    %23 = vst.msk [vmem:[#allocation2 + $0x18] sm:$0xff] %vm19, 0.0
    %24 = vst.msk [vmem:[#allocation2 + $0x20] sm:$0xff] %vm19, 0.0
    %25 = vst.msk [vmem:[#allocation2 + $0x28] sm:$0xff] %vm19, 0.0
    %26 = vst.msk [vmem:[#allocation2 + $0x30] sm:$0xff] %vm19, 0.0
    %27 = vst.msk [vmem:[#allocation2 + $0x38] sm:$0xff] %vm19, 0.0
  $region17: #{tpu_custom_call.1} parent=0 // pred_fallthru
    _
  %v28 = vld [vmem:[%s0] sm:$0xf]
  %v29 = vld [vmem:[%s0 + $0x4] sm:$0xf]
  %v30 = vld [vmem:[%s0 + $0x8] sm:$0xf]
  %v31 = vld [vmem:[%s0 + $0xc] sm:$0xf]
  %v32 = vld [vmem:[%s0 + $0x10] sm:$0xf]
  %v33 = vld [vmem:[%s0 + $0x14] sm:$0xf]
  %v34 = vld [vmem:[%s0 + $0x18] sm:$0xf]
  %v35 = vld [vmem:[%s0 + $0x1c] sm:$0xf]
  %v36 = vmax.bf16 %v28, 0
  %v37 = vmax.bf16 %v29, 0
  %v38 = vmax.bf16 %v30, 0
  %v39 = vmax.bf16 %v31, 0
  %v40 = vmax.bf16 %v32, 0
  %v41 = vmax.bf16 %v33, 0
  %v42 = vmax.bf16 %v34, 0
  %v43 = vmax.bf16 %v35, 0
  %v44 = vld [vmem:[#allocation2] sm:$0xff]
  %v45 = vld [vmem:[#allocation2 + $0x8] sm:$0xff]
  %v46 = vld [vmem:[#allocation2 + $0x10] sm:$0xff]
  %v47 = vld [vmem:[#allocation2 + $0x18] sm:$0xff]
  %v48 = vld [vmem:[#allocation2 + $0x20] sm:$0xff]
  %v49 = vld [vmem:[#allocation2 + $0x28] sm:$0xff]
  %v50 = vld [vmem:[#allocation2 + $0x30] sm:$0xff]
  %v51 = vld [vmem:[#allocation2 + $0x38] sm:$0xff]
  %v52 = vld [vmem:[%s1] sm:$0xf]
  %v53 = vld [vmem:[%s1 + $0x4] sm:$0xf]
  %v54 = vld [vmem:[%s1 + $0x8] sm:$0xf]
  %v55 = vld [vmem:[%s1 + $0xc] sm:$0xf]
  %v56 = vld [vmem:[%s1 + $0x10] sm:$0xf]
  %v57 = vld [vmem:[%s1 + $0x14] sm:$0xf]
  %v58 = vld [vmem:[%s1 + $0x18] sm:$0xf]
  %v59 = vld [vmem:[%s1 + $0x1c] sm:$0xf]
  %v60 = vld [vmem:[%s1 + $0x20] sm:$0xf]
  %v69 = vunpack.c.l.b16 %v36
  %v70 = vunpack.c.l.b16 %v37
  %v71 = vunpack.c.l.b16 %v38
  %v72 = vunpack.c.l.b16 %v39
  %v73 = vunpack.c.l.b16 %v40
  %v74 = vunpack.c.l.b16 %v41
  %v75 = vunpack.c.l.b16 %v42
  %v76 = vunpack.c.l.b16 %v43
  %v77 = vpack.c.b16 %v70, %v69
  %v78 = vpack.c.b16 %v72, %v71
  %v79 = vpack.c.b16 %v74, %v73
  %v80 = vpack.c.b16 %v76, %v75
  %v90 = vunpack.c.l.b16 %v52
  %v91 = vunpack.c.l.b16 %v53
  %v92 = vunpack.c.l.b16 %v54
  %v93 = vunpack.c.l.b16 %v55
  %v94 = vunpack.c.l.b16 %v56
  %v95 = vunpack.c.l.b16 %v57
  %v96 = vunpack.c.l.b16 %v58
  %v97 = vunpack.c.l.b16 %v59
  %v98 = vunpack.c.l.b16 %v60
  %v99 = vpack.c.b16 %v91, %v90
  %v100 = vpack.c.b16 %v93, %v92
  %v101 = vpack.c.b16 %v95, %v94
  %v102 = vpack.c.b16 %v97, %v96
  %v103 = vpack.c.b16 %v98, %v98
  %vm108 = vcmask 588800
  %v110 = vsel %vm108, %v77, 0
  %v113 = vsel %vm108, %v78, 0
  %v116 = vsel %vm108, %v79, 0
  %v119 = vsel %vm108, %v80, 0
  %vm121 = vcmask 1043456
  %v123 = vsel %vm121, %v103, 0
  %125 = vmatprep.subr.bf16.mxu0 0
  %126 = vmatpush1.bf16.msra.mxu0 0
  %127 = vmatprep.subr.bf16.mxu0 0
  %128 = vmatpush1.bf16.msra.mxu0 0
  %129 = vmatprep.subr.bf16.mxu0 0
  %130 = vmatpush1.bf16.msra.mxu0 0
  %131 = vmatprep.subr.bf16.mxu0 0
  %132 = vmatpush1.bf16.msra.mxu0 %v123
  %133 = vmatprep.subr.bf16.mxu0 0
  %134 = vmatpush1.bf16.msra.mxu0 %v102
  %135 = vmatprep.subr.bf16.mxu0 0
  %136 = vmatpush1.bf16.msra.mxu0 %v101
  %137 = vmatprep.subr.bf16.mxu0 0
  %138 = vmatpush1.bf16.msra.mxu0 %v100
  %139 = vmatprep.subr.bf16.mxu0 0
  %140 = vmatpush1.bf16.msra.mxu0 %v99
  %141 = vmatprep.subr.bf16.mxu0 0
  %142 = vmatpush2.bf16.msra.mxu0 0
  %143 = vmatprep.subr.bf16.mxu0 0
  %144 = vmatpush2.bf16.msra.mxu0 0
  %145 = vmatprep.subr.bf16.mxu0 0
  %146 = vmatpush2.bf16.msra.mxu0 0
  %147 = vmatprep.subr.bf16.mxu0 0
  %148 = vmatpush2.bf16.msra.mxu0 0
  %149 = vmatprep.subr.bf16.mxu0 0
  %150 = vmatpush2.bf16.msra.mxu0 0
  %151 = vmatprep.subr.bf16.mxu0 0
  %152 = vmatpush2.bf16.msra.mxu0 0
  %153 = vmatprep.subr.bf16.mxu0 0
  %154 = vmatpush2.bf16.msra.mxu0 0
  %155 = vmatprep.subr.bf16.mxu0 0
  %156 = vmatpush2.bf16.msra.mxu0 0
  %157 = vmatprep.mubr.bf16.mxu0 0
  %158 = vmatmul.mubr.bf16.gmra.mxu0 %v110
  %v159 = vpop.f32.mrf.mxu0
  %v160 = vadd.f32 0.0, %v159
  %v161 = vpop.f32.mrf.mxu0
  %v162 = vpop.f32.mrf.mxu0
  %v163 = vadd.f32 0.0, %v162
  %v164 = vpop.f32.mrf.mxu0
  %165 = vmatprep.mubr.bf16.mxu0 0
  %166 = vmatmul.mubr.bf16.gmra.mxu0 %v113
  %v167 = vpop.f32.mrf.mxu0
  %v168 = vadd.f32 0.0, %v167
  %v169 = vpop.f32.mrf.mxu0
  %v170 = vpop.f32.mrf.mxu0
  %v171 = vadd.f32 0.0, %v170
  %v172 = vpop.f32.mrf.mxu0
  %173 = vmatprep.mubr.bf16.mxu0 0
  %174 = vmatmul.mubr.bf16.gmra.mxu0 %v116
  %v175 = vpop.f32.mrf.mxu0
  %v176 = vadd.f32 0.0, %v175
  %v177 = vpop.f32.mrf.mxu0
  %v178 = vpop.f32.mrf.mxu0
  %v179 = vadd.f32 0.0, %v178
  %v180 = vpop.f32.mrf.mxu0
  %181 = vmatprep.mubr.bf16.mxu0 0
  %182 = vmatmul.mubr.bf16.gmra.mxu0 %v119
  %v183 = vpop.f32.mrf.mxu0
  %v184 = vadd.f32 0.0, %v183
  %v185 = vpop.f32.mrf.mxu0
  %v186 = vpop.f32.mrf.mxu0
  %v187 = vadd.f32 0.0, %v186
  %v188 = vpop.f32.mrf.mxu0
  %189 = vdwg.mxu0
  %v190 = vadd.f32 %v44, %v160
  %v191 = vadd.f32 %v45, %v163
  %v192 = vadd.f32 %v46, %v168
  %v193 = vadd.f32 %v47, %v171
  %v194 = vadd.f32 %v48, %v176
  %v195 = vadd.f32 %v49, %v179
  %v196 = vadd.f32 %v50, %v184
  %v197 = vadd.f32 %v51, %v187
  %vm198 = vcmask 261120
  %199 = vst.msk [vmem:[#allocation2] sm:$0xff] %vm198, %v190
  %200 = vst.msk [vmem:[#allocation2 + $0x8] sm:$0xff] %vm198, %v191
  %201 = vst.msk [vmem:[#allocation2 + $0x10] sm:$0xff] %vm198, %v192
  %202 = vst.msk [vmem:[#allocation2 + $0x18] sm:$0xff] %vm198, %v193
  %203 = vst.msk [vmem:[#allocation2 + $0x20] sm:$0xff] %vm198, %v194
  %204 = vst.msk [vmem:[#allocation2 + $0x28] sm:$0xff] %vm198, %v195
  %205 = vst.msk [vmem:[#allocation2 + $0x30] sm:$0xff] %vm198, %v196
  %206 = vst.msk [vmem:[#allocation2 + $0x38] sm:$0xff] %vm198, %v197
  // Predicated region
  $region18: #{tpu_custom_call.1} parent=0 // pred_check
    %p207 = pneg %p15
  $region19: #{tpu_custom_call.1} parent=0 // pred_check_branch
    %209 = sbr.rel (%p207) target = $region21
  $region20: #{tpu_custom_call.1} parent=0 // pred_region
    %v210 = vld [vmem:[#allocation2] sm:$0xff]
    %v211 = vld [vmem:[#allocation2 + $0x8] sm:$0xff]
    %v212 = vld [vmem:[#allocation2 + $0x10] sm:$0xff]
    %v213 = vld [vmem:[#allocation2 + $0x18] sm:$0xff]
    %v214 = vld [vmem:[#allocation2 + $0x20] sm:$0xff]
    %v215 = vld [vmem:[#allocation2 + $0x28] sm:$0xff]
    %v216 = vld [vmem:[#allocation2 + $0x30] sm:$0xff]
    %v217 = vld [vmem:[#allocation2 + $0x38] sm:$0xff]
    %v218 = vld [vmem:[%s2] sm:$0x1]
    %v220 = vlaneseq
    %v221 = vshrl.u32 %v220, 7
    %v222 = vsub.s32 0, %v221
    %v223 = vrot.slane %v218, %v222
    %v225 = vadd.f32 %v210, %v223
    %v226 = vadd.f32 %v211, %v223
    %v227 = vadd.f32 %v212, %v223
    %v228 = vadd.f32 %v213, %v223
    %v229 = vadd.f32 %v214, %v223
    %v230 = vadd.f32 %v215, %v223
    %v231 = vadd.f32 %v216, %v223
    %v232 = vadd.f32 %v217, %v223
    %233 = vst.msk [vmem:[%s3] sm:$0xff] %vm198, %v225
    %234 = vst.msk [vmem:[%s3 + $0x8] sm:$0xff] %vm198, %v226
    %235 = vst.msk [vmem:[%s3 + $0x10] sm:$0xff] %vm198, %v227
    %236 = vst.msk [vmem:[%s3 + $0x18] sm:$0xff] %vm198, %v228
    %237 = vst.msk [vmem:[%s3 + $0x20] sm:$0xff] %vm198, %v229
    %238 = vst.msk [vmem:[%s3 + $0x28] sm:$0xff] %vm198, %v230
    %239 = vst.msk [vmem:[%s3 + $0x30] sm:$0xff] %vm198, %v231
    %240 = vst.msk [vmem:[%s3 + $0x38] sm:$0xff] %vm198, %v232
  $region21: #{tpu_custom_call.1} parent=0 // pred_fallthru
    _
  // Predicated region
  $region22: #{tpu_custom_call.1} parent=0 // pred_check
    _
  $region23: #{tpu_custom_call.1} parent=0 // pred_check_branch
    %242 = sbr.rel (0) target = $region25
  $region24: #{tpu_custom_call.1} parent=0 // pred_region
    _
  $region25: #{tpu_custom_call.1} parent=0 // pred_fallthru
    _
  // Predicated region
  $region26: #{tpu_custom_call.1} parent=0 // pred_check
    _
  $region27: #{tpu_custom_call.1} parent=0 // pred_check_branch
    %244 = sbr.rel (0) target = $region29
  $region28: #{tpu_custom_call.1} parent=0 // pred_region
    _
  $region29: #{tpu_custom_call.1} parent=0 // pred_fallthru
    _

</llo_original>
